<compile_context>
chip_gen: v7x
topology: tpu7x:2x2x1
jax: 0.10.0
libtpu: 0.0.40
codegen_flags: <defaults>
</compile_context>

<pallas_src>
import jax
import jax.numpy as jnp
from jax.experimental import pallas as pl
from jax.experimental.pallas import tpu as pltpu


def mlp_kernel(x_ref, w1_ref, b1_ref, w2_ref, b2_ref, o_ref):
    """One batch tile, transposed activations.

    x_ref  : (TILE_B, input_size)   VMEM (streamed per grid step)
    w1_ref : (hidden, input_size)   VMEM (grid-invariant, PyTorch layout)
    b1_ref : (hidden, 1)            VMEM (grid-invariant, column)
    w2_ref : (1, hidden)            VMEM (grid-invariant, PyTorch layout)
    b2_ref : (1,)                   SMEM scalar
    o_ref  : (1, TILE_B)            VMEM (lane-dense output row)
    """
    # Layer 1 on the MXU: hT[h, b] = sum_k w1[h, k] * x[b, k]
    # (contraction on the last dim of both operands -- same dimension numbers as
    #  the q @ k.T step of flash attention).
    h_t = jax.lax.dot_general(
        w1_ref[...], x_ref[...],
        dimension_numbers=(((1,), (1,)), ((), ())),
        preferred_element_type=jnp.float32,
    )
    # Bias (broadcast along lanes) + ReLU on the VPU.
    h_t = jnp.maximum(h_t + b1_ref[...], 0.0)

    # Layer 2 on the MXU: z[1, b] = w2_row @ hT ; bias is an SMEM scalar.
    z = jnp.dot(w2_ref[...], h_t, preferred_element_type=jnp.float32) + b2_ref[0]

    # Sigmoid epilogue on a lane-dense (1, TILE_B) row: exp lowers to the EUP and
    # only touches TILE_B/128 vregs.
    o_ref[...] = jax.nn.sigmoid(z)


def neural_net_forward(x, w1, b1, w2, b2, *, tile_b=2048):
    """y = sigmoid(relu(x @ w1.T + b1) @ w2.T + b2), weights in PyTorch layout."""
    assert tile_b % 128 == 0, "tile_b must be a multiple of 128 (lane-dense output)"
    batch, input_size = x.shape
    hidden = w1.shape[0]

    # Pad the batch to a multiple of tile_b (zero rows, sliced off below) so every
    # grid step processes a full, aligned tile.
    n_tiles = pl.cdiv(batch, tile_b)
    padded = n_tiles * tile_b
    x = x.astype(jnp.float32)
    if padded != batch:
        x = jnp.pad(x, ((0, padded - batch), (0, 0)))

    w1_f = w1.astype(jnp.float32)                          # (hidden, input_size)
    b1_col = b1.reshape(hidden, 1).astype(jnp.float32)     # column: broadcasts over lanes
    w2_row = w2.reshape(1, hidden).astype(jnp.float32)     # (1, hidden)
    b2_s = b2.reshape(1).astype(jnp.float32)               # scalar for SMEM

    cost = pl.CostEstimate(
        flops=2 * padded * (input_size * hidden + hidden),
        transcendentals=padded,
        bytes_accessed=(x.size + w1_f.size + b1_col.size + w2_row.size + 1 + padded) * 4,
    )

    out = pl.pallas_call(
        mlp_kernel,
        out_shape=jax.ShapeDtypeStruct((1, padded), jnp.float32),
        grid=(n_tiles,),
        in_specs=[
            pl.BlockSpec((tile_b, input_size), lambda i: (i, 0)),    # stream x tiles
            pl.BlockSpec((hidden, input_size), lambda i: (0, 0)),    # w1 (resident)
            pl.BlockSpec((hidden, 1), lambda i: (0, 0)),             # b1 column (resident)
            pl.BlockSpec((1, hidden), lambda i: (0, 0)),             # w2 row (resident)
            pl.BlockSpec(memory_space=pltpu.MemorySpace.SMEM),       # b2 scalar
        ],
        out_specs=pl.BlockSpec((1, tile_b), lambda i: (0, i)),       # lane-dense output row
        compiler_params=pltpu.CompilerParams(
            dimension_semantics=("parallel",),   # megacore-shard the batch on v7x
        ),
        cost_estimate=cost,
    )(x, w1_f, b1_col, w2_row, b2_s)

    # (1, padded) -> (padded, 1) keeps element order (cheap), then drop padding.
    return out.reshape(padded, 1)[:batch]


if __name__ == "__main__":
    batch = 300          # deliberately not a multiple of tile_b -> exercises padding path
    input_size = 16
    hidden_size = 32
    tile_b = 256         # small tile for the demo; use 1024-4096 at production batch sizes

    key = jax.random.PRNGKey(0)
    kx, kw1, kb1, kw2, kb2 = jax.random.split(key, 5)

    # PyTorch-like uniform(-1/sqrt(fan_in), 1/sqrt(fan_in)) init, nn.Linear layout.
    bound1 = 1.0 / jnp.sqrt(jnp.float32(input_size))
    bound2 = 1.0 / jnp.sqrt(jnp.float32(hidden_size))
    w1 = jax.random.uniform(kw1, (hidden_size, input_size), jnp.float32, -bound1, bound1)
    b1 = jax.random.uniform(kb1, (hidden_size,), jnp.float32, -bound1, bound1)
    w2 = jax.random.uniform(kw2, (1, hidden_size), jnp.float32, -bound2, bound2)
    b2 = jax.random.uniform(kb2, (1,), jnp.float32, -bound2, bound2)

    x = jax.random.normal(kx, (batch, input_size), jnp.float32)

    out = neural_net_forward(x, w1, b1, w2, b2, tile_b=tile_b)
    jax.block_until_ready(out)

    # Pure-JAX reference (PyTorch semantics: x @ W.T + b).
    ref = jax.nn.sigmoid(jnp.maximum(x @ w1.T + b1, 0.0) @ w2.T + b2)
    assert out.shape == (batch, 1)
    assert jnp.allclose(out, ref, atol=1e-5, rtol=1e-5), float(jnp.max(jnp.abs(out - ref)))

    print("KERNEL_OK")
</pallas_src>

<mosaic_0001>
module attributes {stable_mosaic.version = 11 : i64} {
  func.func @mlp_kernel(%arg0: i32, %arg1: memref<256x16xf32, #tpu.memory_space<vmem>>, %arg2: memref<32x16xf32, #tpu.memory_space<vmem>>, %arg3: memref<32x1xf32, #tpu.memory_space<vmem>>, %arg4: memref<1x32xf32, #tpu.memory_space<vmem>>, %arg5: memref<1xf32, #tpu.memory_space<smem>>, %arg6: memref<1x256xf32, #tpu.memory_space<vmem>>) attributes {dimension_semantics = [#tpu.dimension_semantics<parallel>], iteration_bounds = array<i64: 2>, scalar_prefetch = 0 : i64, scratch_operands = 0 : i64, tpu.core_type = #tpu.core_type<tc>, window_params = [{transform_indices = @transform_0, window_bounds = array<i64: 256, 16>}, {pipeline_mode = #tpu.pipeline_mode<synchronous>, transform_indices = @transform_1, window_bounds = array<i64: 32, 16>}, {pipeline_mode = #tpu.pipeline_mode<synchronous>, transform_indices = @transform_2, window_bounds = array<i64: 32, 1>}, {pipeline_mode = #tpu.pipeline_mode<synchronous>, transform_indices = @transform_3, window_bounds = array<i64: 1, 32>}, {transform_indices = @transform_4, window_bounds = array<i64: 1>}, {transform_indices = @transform_5, window_bounds = array<i64: 1, 256>}]} {
    %c0 = arith.constant 0 : index
    %c0_0 = arith.constant 0 : index
    %0 = vector.load %arg2[%c0, %c0_0] : memref<32x16xf32, #tpu.memory_space<vmem>>, vector<32x16xf32>
    %c0_1 = arith.constant 0 : index
    %c0_2 = arith.constant 0 : index
    %1 = vector.load %arg1[%c0_1, %c0_2] : memref<256x16xf32, #tpu.memory_space<vmem>>, vector<256x16xf32>
    %cst = arith.constant dense<0.000000e+00> : vector<32x256xf32>
    %2 = tpu.matmul %0, %1, %cst {dimension_numbers = #tpu.dot_dimension_numbers<[1], [1], [0], [0], [0, 0, 1, 0], [], []>} : vector<32x16xf32>, vector<256x16xf32>, vector<32x256xf32> -> vector<32x256xf32>
    %c0_3 = arith.constant 0 : index
    %c0_4 = arith.constant 0 : index
    %3 = vector.load %arg3[%c0_3, %c0_4] : memref<32x1xf32, #tpu.memory_space<vmem>>, vector<32x1xf32>
    %4 = vector.broadcast %3 : vector<32x1xf32> to vector<32x256xf32>
    %5 = arith.addf %2, %4 : vector<32x256xf32>
    %cst_5 = arith.constant 0.000000e+00 : f32
    %6 = vector.broadcast %cst_5 : f32 to vector<32x256xf32>
    %7 = arith.maximumf %5, %6 : vector<32x256xf32>
    %c0_6 = arith.constant 0 : index
    %c0_7 = arith.constant 0 : index
    %8 = vector.load %arg4[%c0_6, %c0_7] : memref<1x32xf32, #tpu.memory_space<vmem>>, vector<1x32xf32>
    %cst_8 = arith.constant dense<0.000000e+00> : vector<1x256xf32>
    %9 = tpu.matmul %8, %7, %cst_8 {dimension_numbers = #tpu.dot_dimension_numbers<[1], [0], [0], [1], [0, 0, 1, 1], [], []>} : vector<1x32xf32>, vector<32x256xf32>, vector<1x256xf32> -> vector<1x256xf32>
    %c0_9 = arith.constant 0 : index
    %10 = memref.load %arg5[%c0_9] : memref<1xf32, #tpu.memory_space<smem>>
    %11 = vector.broadcast %10 : f32 to vector<1x256xf32>
    %12 = arith.addf %9, %11 : vector<1x256xf32>
    %13 = arith.negf %12 : vector<1x256xf32>
    %14 = math.exp %13 : vector<1x256xf32>
    %cst_10 = arith.constant 1.000000e+00 : f32
    %15 = vector.broadcast %cst_10 : f32 to vector<1x256xf32>
    %16 = arith.addf %15, %14 : vector<1x256xf32>
    %17 = arith.divf %15, %16 : vector<1x256xf32>
    %c0_11 = arith.constant 0 : index
    %c0_12 = arith.constant 0 : index
    %18 = vector.load %arg6[%c0_11, %c0_12] : memref<1x256xf32, #tpu.memory_space<vmem>>, vector<1x256xf32>
    tpu.vector_store %arg6[%c0_11, %c0_12], %17 {strides = array<i32>} : memref<1x256xf32, #tpu.memory_space<vmem>>, vector<1x256xf32>,
    return
  }
  func.func @transform_0(%arg0: i32) -> (i32, i32) {
    %c0_i32 = arith.constant 0 : i32
    %c0_i32_0 = arith.constant 0 : i32
    return %arg0, %c0_i32 : i32, i32
  }
  func.func @transform_1(%arg0: i32) -> (i32, i32) {
    %c0_i32 = arith.constant 0 : i32
    %c0_i32_0 = arith.constant 0 : i32
    %c0_i32_1 = arith.constant 0 : i32
    return %c0_i32, %c0_i32_0 : i32, i32
  }
  func.func @transform_2(%arg0: i32) -> (i32, i32) {
    %c0_i32 = arith.constant 0 : i32
    %c0_i32_0 = arith.constant 0 : i32
    %c0_i32_1 = arith.constant 0 : i32
    return %c0_i32, %c0_i32_0 : i32, i32
  }
  func.func @transform_3(%arg0: i32) -> (i32, i32) {
    %c0_i32 = arith.constant 0 : i32
    %c0_i32_0 = arith.constant 0 : i32
    %c0_i32_1 = arith.constant 0 : i32
    return %c0_i32, %c0_i32_0 : i32, i32
  }
  func.func @transform_4(%arg0: i32) -> i32 {
    %c0_i32 = arith.constant 0 : i32
    %c0_i32_0 = arith.constant 0 : i32
    return %c0_i32 : i32
  }
  func.func @transform_5(%arg0: i32) -> (i32, i32) {
    %c0_i32 = arith.constant 0 : i32
    %c0_i32_0 = arith.constant 0 : i32
    return %c0_i32, %arg0 : i32, i32
  }
}

</mosaic_0001>

<llo_original>
// kernel: tpu_custom_call.1
$region0: #{tpu_custom_call.1}
  #allocation0 [shape = 'u32[]', space=smem, size = 0x4, offset = 0x4, fixed_abs, tag = 'smem constant byte address 0x4 - core index']
  #allocation1 [shape = 'u32[144,128]{1,0:T(1,128)}', space=vmem, size = 0x12000, scoped, tag = 'internal scratch']
  #allocation2 [shape = 'f32[1]{0:T(128)S(6)}', space=smem, size = 0x200, scoped, tag = 'scoped memory for tpu_custom_call.1']
  %s0 = inlined_call_operand.vmem [shape: f32[512,16], index: 0, kind: input, shape index: {}]
  %s1 = inlined_call_operand.vmem [shape: f32[32,16], index: 1, kind: input, shape index: {}]
  %s2 = inlined_call_operand.vmem [shape: f32[32,1], index: 2, kind: input, shape index: {}]
  %s3 = inlined_call_operand.vmem [shape: f32[1,32], index: 3, kind: input, shape index: {}]
  %s4 = inlined_call_operand.<no memory space> [shape: f32[1], index: 4, kind: input, shape index: {}]
  %s5 = inlined_call_operand.hbm [shape: f32[1,512], index: 5, kind: output, shape index: {}]
  %s6 = sld [smem:[#allocation0]]
  $region53: #{tpu_custom_call.1} parent=0
    _
  %s8 = ssub.s32 1, %s6
  %s9 = scalar_select 0, %s8, %s6
  %10 = sst [smem:[#allocation2]] %s4
  $region1: #{tpu_custom_call.1} parent=0
    #allocation3 [shape = 'u8[2048]{0}', space=vmem, size = 0x800, scoped, tag = 'output window, operand 0']
    #allocation4 [shape = 's32[2]{0}', space=sflag, size = 0x8, scoped, tag = 'scoped memory for tpu_custom_call.1']
    %11 = vsyncpa [#allocation4], 0
    %s12 = scalar_lea.sflag [#allocation4], 1
    %13 = vsyncpa %s12, 0
    loop: start=0, step=1, limit=4
    $region2: #{tpu_custom_call.1} parent=1 // loop_pre_header
      _
    $region3: #{tpu_custom_call.1} parent=1 // loop_header
      %s15 = sphi 0, %s19
      %p16 = scmp.ge.s32.totalorder %s15, 4
      %s25 = sphi 0, %s27
      %s28 = sphi 0, %s25
      %s29 = sphi 0, %s28
      %s45 = sphi 0, %s29
      %s49 = sphi 0, %s49
      %s51 = sphi 0, %s49
      %s52 = sphi 0, %s51
      %s66 = sphi 0, %s52
      %s70 = sphi 0, %s70
      %s72 = sphi 0, %s70
      %s73 = sphi 0, %s72
      %s87 = sphi 0, %s73
      %s91 = sphi 0, %s91
      %s93 = sphi 0, %s91
      %s94 = sphi 0, %s93
      %s108 = sphi 0, %s94
      %s112 = sphi 0, %s112
      %s114 = sphi 0, %s112
      %s115 = sphi 0, %s114
      %s129 = sphi 0, %s115
      %s135 = sphi 0, %s137
      %s138 = sphi 0, %s135
      %s139 = sphi 0, %s138
      %s155 = sphi 0, %s139
    $region4: #{tpu_custom_call.1} parent=1 // loop_header_branch
      %18 = sbr.rel (%p16) target = $region8
    $region5: #{tpu_custom_call.1} parent=1 // loop_body
      %s20 = ssub.s32 %s15, 1
      %s21 = ssub.s32 %s15, 2
      %s22 = sadd.s32 %s15, 1
      %s23 = ssub.s32 %s15, %s22
      %p24 = scmp.eq.s32.totalorder %s23, 0
      %s26 = sadd.s32 %s25, 1
      %s27 = scalar_select %p24, %s25, %s26
      %p30 = pneg %p24
      %p31 = scmp.eq.s32.totalorder %s15, 1
      %p32 = por %p30, %p31
      %p33 = scmp.ne.s32.totalorder %s25, %s28
      %p34 = scmp.eq.s32.totalorder %s15, 0
      %p35 = por %p33, %p34
      %p36 = scmp.ne.s32.totalorder %s25, %s28
      %p37 = scmp.eq.s32.totalorder %s20, 1
      %p38 = por %p36, %p37
      %p39 = scmp.ne.s32.totalorder %s28, %s29
      %p40 = scmp.eq.s32.totalorder %s20, 0
      %p41 = por %p39, %p40
      %p42 = scmp.ne.s32.totalorder %s28, %s29
      %p43 = scmp.eq.s32.totalorder %s21, 1
      %p44 = por %p42, %p43
      %p46 = scmp.ne.s32.totalorder %s29, %s45
      %p47 = scmp.eq.s32.totalorder %s21, 0
      %p48 = por %p46, %p47
      %s50 = sadd.s32 %s49, 1
      %p53 = scmp.eq.s32.totalorder %s15, 1
      %p54 = scmp.ne.s32.totalorder %s49, %s51
      %p55 = scmp.eq.s32.totalorder %s15, 0
      %p56 = por %p54, %p55
      %p57 = scmp.ne.s32.totalorder %s49, %s51
      %p58 = scmp.eq.s32.totalorder %s20, 1
      %p59 = por %p57, %p58
      %p60 = scmp.ne.s32.totalorder %s51, %s52
      %p61 = scmp.eq.s32.totalorder %s20, 0
      %p62 = por %p60, %p61
      %p63 = scmp.ne.s32.totalorder %s51, %s52
      %p64 = scmp.eq.s32.totalorder %s21, 1
      %p65 = por %p63, %p64
      %p67 = scmp.ne.s32.totalorder %s52, %s66
      %p68 = scmp.eq.s32.totalorder %s21, 0
      %p69 = por %p67, %p68
      %s71 = sadd.s32 %s70, 1
      %p74 = scmp.eq.s32.totalorder %s15, 1
      %p75 = scmp.ne.s32.totalorder %s70, %s72
      %p76 = scmp.eq.s32.totalorder %s15, 0
      %p77 = por %p75, %p76
      %p78 = scmp.ne.s32.totalorder %s70, %s72
      %p79 = scmp.eq.s32.totalorder %s20, 1
      %p80 = por %p78, %p79
      %p81 = scmp.ne.s32.totalorder %s72, %s73
      %p82 = scmp.eq.s32.totalorder %s20, 0
      %p83 = por %p81, %p82
      %p84 = scmp.ne.s32.totalorder %s72, %s73
      %p85 = scmp.eq.s32.totalorder %s21, 1
      %p86 = por %p84, %p85
      %p88 = scmp.ne.s32.totalorder %s73, %s87
      %p89 = scmp.eq.s32.totalorder %s21, 0
      %p90 = por %p88, %p89
      %s92 = sadd.s32 %s91, 1
      %p95 = scmp.eq.s32.totalorder %s15, 1
      %p96 = scmp.ne.s32.totalorder %s91, %s93
      %p97 = scmp.eq.s32.totalorder %s15, 0
      %p98 = por %p96, %p97
      %p99 = scmp.ne.s32.totalorder %s91, %s93
      %p100 = scmp.eq.s32.totalorder %s20, 1
      %p101 = por %p99, %p100
      %p102 = scmp.ne.s32.totalorder %s93, %s94
      %p103 = scmp.eq.s32.totalorder %s20, 0
      %p104 = por %p102, %p103
      %p105 = scmp.ne.s32.totalorder %s93, %s94
      %p106 = scmp.eq.s32.totalorder %s21, 1
      %p107 = por %p105, %p106
      %p109 = scmp.ne.s32.totalorder %s94, %s108
      %p110 = scmp.eq.s32.totalorder %s21, 0
      %p111 = por %p109, %p110
      %s113 = sadd.s32 %s112, 1
      %p116 = scmp.eq.s32.totalorder %s15, 1
      %p117 = scmp.ne.s32.totalorder %s112, %s114
      %p118 = scmp.eq.s32.totalorder %s15, 0
      %p119 = por %p117, %p118
      %p120 = scmp.ne.s32.totalorder %s112, %s114
      %p121 = scmp.eq.s32.totalorder %s20, 1
      %p122 = por %p120, %p121
      %p123 = scmp.ne.s32.totalorder %s114, %s115
      %p124 = scmp.eq.s32.totalorder %s20, 0
      %p125 = por %p123, %p124
      %p126 = scmp.ne.s32.totalorder %s114, %s115
      %p127 = scmp.eq.s32.totalorder %s21, 1
      %p128 = por %p126, %p127
      %p130 = scmp.ne.s32.totalorder %s115, %s129
      %p131 = scmp.eq.s32.totalorder %s21, 0
      %p132 = por %p130, %p131
      %s133 = ssub.s32 %s15, %s22
      %p134 = scmp.eq.s32.totalorder %s133, 0
      %s136 = sadd.s32 %s135, 1
      %s137 = scalar_select %p134, %s135, %s136
      %p140 = pneg %p134
      %p141 = scmp.eq.s32.totalorder %s15, 1
      %p142 = por %p140, %p141
      %p143 = scmp.ne.s32.totalorder %s135, %s138
      %p144 = scmp.eq.s32.totalorder %s15, 0
      %p145 = por %p143, %p144
      %p146 = scmp.ne.s32.totalorder %s135, %s138
      %p147 = scmp.eq.s32.totalorder %s20, 1
      %p148 = por %p146, %p147
      %p149 = scmp.ne.s32.totalorder %s138, %s139
      %p150 = scmp.eq.s32.totalorder %s20, 0
      %p151 = por %p149, %p150
      %p152 = scmp.ne.s32.totalorder %s138, %s139
      %p153 = scmp.eq.s32.totalorder %s21, 1
      %p154 = por %p152, %p153
      %p156 = scmp.ne.s32.totalorder %s139, %s155
      %p157 = scmp.eq.s32.totalorder %s21, 0
      %p158 = por %p156, %p157
      %p159 = scmp.le.s32.totalorder 1, %s15
      %p160 = scmp.lt.s32.totalorder %s15, 3
      %p161 = pnand %p159, %p160
      %p162 = pneg %p161
      // Predicated region
      $region9: #{tpu_custom_call.1} parent=5 // pred_check
        _
      $region10: #{tpu_custom_call.1} parent=5 // pred_check_branch
        %164 = sbr.rel (%p161) target = $region12
      $region11: #{tpu_custom_call.1} parent=5 // pred_region
        %s165 = ssub.s32 %s15, 1
        // Predicated region
        $region13: #{tpu_custom_call.1} parent=11 // pred_check
          %p166 = pneg %p62
        $region14: #{tpu_custom_call.1} parent=11 // pred_check_branch
          %168 = sbr.rel (%p166) target = $region16
        $region15: #{tpu_custom_call.1} parent=11 // pred_region
          _
        $region16: #{tpu_custom_call.1} parent=11 // pred_fallthru
          _
        // Predicated region
        $region17: #{tpu_custom_call.1} parent=11 // pred_check
          %p169 = pneg %p83
        $region18: #{tpu_custom_call.1} parent=11 // pred_check_branch
          %171 = sbr.rel (%p169) target = $region20
        $region19: #{tpu_custom_call.1} parent=11 // pred_region
          _
        $region20: #{tpu_custom_call.1} parent=11 // pred_fallthru
          _
        // Predicated region
        $region21: #{tpu_custom_call.1} parent=11 // pred_check
          %p172 = pneg %p104
        $region22: #{tpu_custom_call.1} parent=11 // pred_check_branch
          %174 = sbr.rel (%p172) target = $region24
        $region23: #{tpu_custom_call.1} parent=11 // pred_region
          _
        $region24: #{tpu_custom_call.1} parent=11 // pred_fallthru
          _
        // Predicated region
        $region25: #{tpu_custom_call.1} parent=11 // pred_check
          %p175 = pneg %p125
        $region26: #{tpu_custom_call.1} parent=11 // pred_check_branch
          %177 = sbr.rel (%p175) target = $region28
        $region27: #{tpu_custom_call.1} parent=11 // pred_region
          _
        $region28: #{tpu_custom_call.1} parent=11 // pred_fallthru
          _
      $region12: #{tpu_custom_call.1} parent=5 // pred_fallthru
        _
      %p178 = scmp.lt.s32.totalorder %s15, 2
      // Predicated region
      $region29: #{tpu_custom_call.1} parent=5 // pred_check
        %p179 = pneg %p178
      $region30: #{tpu_custom_call.1} parent=5 // pred_check_branch
        %181 = sbr.rel (%p179) target = $region32
      $region31: #{tpu_custom_call.1} parent=5 // pred_region
        // Predicated region
        $region33: #{tpu_custom_call.1} parent=31 // pred_check
          %p182 = pneg %p35
        $region34: #{tpu_custom_call.1} parent=31 // pred_check_branch
          %184 = sbr.rel (%p182) target = $region36
        $region35: #{tpu_custom_call.1} parent=31 // pred_region
          %s185 = smul.u32 32, %s15
          %p186 = scmp.lt.s32.totalorder %s185, 63
          %s187 = scalar_select %p186, %s185, 63
          %s188 = smul.addr %s187, 8
          %s189 = scalar_lea.vmem %s0, %s188
          %s190 = smul.u32 32, %s15
        $region36: #{tpu_custom_call.1} parent=31 // pred_fallthru
          _
      $region32: #{tpu_custom_call.1} parent=5 // pred_fallthru
        _
      %p191 = scmp.le.s32.totalorder 1, %s15
      %p192 = scmp.lt.s32.totalorder %s15, 3
      %p193 = pnand %p191, %p192
      %p194 = pneg %p193
      // Predicated region
      $region37: #{tpu_custom_call.1} parent=5 // pred_check
        _
      $region38: #{tpu_custom_call.1} parent=5 // pred_check_branch
        %196 = sbr.rel (%p193) target = $region40
      $region39: #{tpu_custom_call.1} parent=5 // pred_region
        %s197 = ssub.s32 %s15, 1
        %s198 = smul.u32 32, %s20
        %p199 = scmp.lt.s32.totalorder %s198, 63
        %s200 = scalar_select %p199, %s198, 63
        %s201 = smul.addr %s200, 8
        %s202 = scalar_lea.vmem %s0, %s201
        %p203 = pneg %p41
        %p204 = pneg %p38
        %p205 = pneg %p62
        %p206 = pneg %p59
        %p207 = pneg %p83
        %p208 = pneg %p80
        %p209 = pneg %p104
        %p210 = pneg %p101
        %p211 = pneg %p125
        %p212 = pneg %p122
        %p213 = pneg %p151
        %p214 = pneg %p148
        %s215 = sand.u32 %s138, 1
        %s216 = scalar_lea.sflag [#allocation4], %s215
        %s217 = sand.u32 %s138, 1
        %s218 = smul.addr %s217, 2
        %s219 = scalar_lea.vmem [#allocation3], %s218
        %s220 = smul.u32 32, %s20
        %p221 = scmp.lt.s32.totalorder %s220, 63
        %s222 = scalar_select %p221, %s220, 63
        %s223 = smul.addr %s222, 8
        %s224 = scalar_lea.vmem %s0, %s223
        %s225 = smul.u32 32, %s20
        %s226 = smul.u32 2, %s20
        %v227 = vld [vmem:[%s1] sm:$0xff]
        %v228 = vld [vmem:[%s1 + $0x8] sm:$0xff]
        %v229 = vld [vmem:[%s1 + $0x10] sm:$0xff]
        %v230 = vld [vmem:[%s1 + $0x18] sm:$0xff]
        %v231 = vld [vmem:[%s224] sm:$0xff]
        %v232 = vld [vmem:[%s224 + $0x8] sm:$0xff]
        %v233 = vld [vmem:[%s224 + $0x10] sm:$0xff]
        %v234 = vld [vmem:[%s224 + $0x18] sm:$0xff]
        %v235 = vld [vmem:[%s224 + $0x20] sm:$0xff]
        %v236 = vld [vmem:[%s224 + $0x28] sm:$0xff]
        %v237 = vld [vmem:[%s224 + $0x30] sm:$0xff]
        %v238 = vld [vmem:[%s224 + $0x38] sm:$0xff]
        %v239 = vld [vmem:[%s224 + $0x40] sm:$0xff]
        %v240 = vld [vmem:[%s224 + $0x48] sm:$0xff]
        %v241 = vld [vmem:[%s224 + $0x50] sm:$0xff]
        %v242 = vld [vmem:[%s224 + $0x58] sm:$0xff]
        %v243 = vld [vmem:[%s224 + $0x60] sm:$0xff]
        %v244 = vld [vmem:[%s224 + $0x68] sm:$0xff]
        %v245 = vld [vmem:[%s224 + $0x70] sm:$0xff]
        %v246 = vld [vmem:[%s224 + $0x78] sm:$0xff]
        %v247 = vld [vmem:[%s224 + $0x80] sm:$0xff]
        %v248 = vld [vmem:[%s224 + $0x88] sm:$0xff]
        %v249 = vld [vmem:[%s224 + $0x90] sm:$0xff]
        %v250 = vld [vmem:[%s224 + $0x98] sm:$0xff]
        %v251 = vld [vmem:[%s224 + $0xa0] sm:$0xff]
        %v252 = vld [vmem:[%s224 + $0xa8] sm:$0xff]
        %v253 = vld [vmem:[%s224 + $0xb0] sm:$0xff]
        %v254 = vld [vmem:[%s224 + $0xb8] sm:$0xff]
        %v255 = vld [vmem:[%s224 + $0xc0] sm:$0xff]
        %v256 = vld [vmem:[%s224 + $0xc8] sm:$0xff]
        %v257 = vld [vmem:[%s224 + $0xd0] sm:$0xff]
        %v258 = vld [vmem:[%s224 + $0xd8] sm:$0xff]
        %v259 = vld [vmem:[%s224 + $0xe0] sm:$0xff]
        %v260 = vld [vmem:[%s224 + $0xe8] sm:$0xff]
        %v261 = vld [vmem:[%s224 + $0xf0] sm:$0xff]
        %v262 = vld [vmem:[%s224 + $0xf8] sm:$0xff]
        %v263 = vld [vmem:[%s2] sm:$0xff]
        %v264 = vld [vmem:[%s2 + $0x8] sm:$0xff]
        %v265 = vld [vmem:[%s2 + $0x10] sm:$0xff]
        %v266 = vld [vmem:[%s2 + $0x18] sm:$0xff]
        %268 = vset.pattern.permute.xlu0 0
        %269 = vperm.xlu0 %268, %v263
        %v270 = vpop.permute.xlu0 %269
        %273 = vset.pattern.permute.xlu0 0
        %274 = vperm.xlu0 %273, %v264
        %v275 = vpop.permute.xlu0 %274
        %278 = vset.pattern.permute.xlu0 0
        %279 = vperm.xlu0 %278, %v265
        %v280 = vpop.permute.xlu0 %279
        %283 = vset.pattern.permute.xlu0 0
        %284 = vperm.xlu0 %283, %v266
        %v285 = vpop.permute.xlu0 %284
        %vm287 = vcmask 130048
        %v289 = vsel %vm287, %v227, 0
        %v292 = vsel %vm287, %v228, 0
        %v295 = vsel %vm287, %v229, 0
        %v298 = vsel %vm287, %v230, 0
        %v301 = vsel %vm287, %v231, 0
        %v304 = vsel %vm287, %v232, 0
        %v307 = vsel %vm287, %v233, 0
        %v310 = vsel %vm287, %v234, 0
        %v313 = vsel %vm287, %v235, 0
        %v316 = vsel %vm287, %v236, 0
        %v319 = vsel %vm287, %v237, 0
        %v322 = vsel %vm287, %v238, 0
        %v325 = vsel %vm287, %v239, 0
        %v328 = vsel %vm287, %v240, 0
        %v331 = vsel %vm287, %v241, 0
        %v334 = vsel %vm287, %v242, 0
        %v337 = vsel %vm287, %v243, 0
        %v340 = vsel %vm287, %v244, 0
        %v343 = vsel %vm287, %v245, 0
        %v346 = vsel %vm287, %v246, 0
        %v349 = vsel %vm287, %v247, 0
        %v352 = vsel %vm287, %v248, 0
        %v355 = vsel %vm287, %v249, 0
        %v358 = vsel %vm287, %v250, 0
        %v361 = vsel %vm287, %v251, 0
        %v364 = vsel %vm287, %v252, 0
        %v367 = vsel %vm287, %v253, 0
        %v370 = vsel %vm287, %v254, 0
        %v373 = vsel %vm287, %v255, 0
        %v376 = vsel %vm287, %v256, 0
        %v379 = vsel %vm287, %v257, 0
        %v382 = vsel %vm287, %v258, 0
        %v385 = vsel %vm287, %v259, 0
        %v388 = vsel %vm287, %v260, 0
        %v391 = vsel %vm287, %v261, 0
        %v394 = vsel %vm287, %v262, 0
        %396 = vmatprep.subr.mxu0 0.0
        %397 = vmatpush1.xpose.msra.mxu0 %v301
        %398 = vmatprep.subr.mxu0 0.0
        %399 = vmatpush1.xpose.msra.mxu0 %v304
        %400 = vmatprep.subr.mxu0 0.0
        %401 = vmatpush1.xpose.msra.mxu0 %v307
        %402 = vmatprep.subr.mxu0 0.0
        %403 = vmatpush1.xpose.msra.mxu0 %v310
        %404 = vmatprep.subr.mxu0 0.0
        %405 = vmatpush1.xpose.msra.mxu0 %v313
        %406 = vmatprep.subr.mxu0 0.0
        %407 = vmatpush1.xpose.msra.mxu0 %v316
        %408 = vmatprep.subr.mxu0 0.0
        %409 = vmatpush1.xpose.msra.mxu0 %v319
        %410 = vmatprep.subr.mxu0 0.0
        %411 = vmatpush1.xpose.msra.mxu0 %v322
        %412 = vmatprep.subr.mxu0 0.0
        %413 = vmatpush1.xpose.msra.mxu0 %v325
        %414 = vmatprep.subr.mxu0 0.0
        %415 = vmatpush1.xpose.msra.mxu0 %v328
        %416 = vmatprep.subr.mxu0 0.0
        %417 = vmatpush1.xpose.msra.mxu0 %v331
        %418 = vmatprep.subr.mxu0 0.0
        %419 = vmatpush1.xpose.msra.mxu0 %v334
        %420 = vmatprep.subr.mxu0 0.0
        %421 = vmatpush1.xpose.msra.mxu0 %v337
        %422 = vmatprep.subr.mxu0 0.0
        %423 = vmatpush1.xpose.msra.mxu0 %v340
        %424 = vmatprep.subr.mxu0 0.0
        %425 = vmatpush1.xpose.msra.mxu0 %v343
        %426 = vmatprep.subr.mxu0 0.0
        %427 = vmatpush1.xpose.msra.mxu0 %v346
        %428 = vmatprep.subr.mxu0 0.0
        %429 = vmatpush1.xpose.msra.mxu0 %v349
        %430 = vmatprep.subr.mxu0 0.0
        %431 = vmatpush1.xpose.msra.mxu0 %v352
        %432 = vmatprep.subr.mxu0 0.0
        %433 = vmatpush1.xpose.msra.mxu0 %v355
        %434 = vmatprep.subr.mxu0 0.0
        %435 = vmatpush1.xpose.msra.mxu0 %v358
        %436 = vmatprep.subr.mxu0 0.0
        %437 = vmatpush1.xpose.msra.mxu0 %v361
        %438 = vmatprep.subr.mxu0 0.0
        %439 = vmatpush1.xpose.msra.mxu0 %v364
        %440 = vmatprep.subr.mxu0 0.0
        %441 = vmatpush1.xpose.msra.mxu0 %v367
        %442 = vmatprep.subr.mxu0 0.0
        %443 = vmatpush1.xpose.msra.mxu0 %v370
        %444 = vmatprep.subr.mxu0 0.0
        %445 = vmatpush1.xpose.msra.mxu0 %v373
        %446 = vmatprep.subr.mxu0 0.0
        %447 = vmatpush1.xpose.msra.mxu0 %v376
        %448 = vmatprep.subr.mxu0 0.0
        %449 = vmatpush1.xpose.msra.mxu0 %v379
        %450 = vmatprep.subr.mxu0 0.0
        %451 = vmatpush1.xpose.msra.mxu0 %v382
        %452 = vmatprep.subr.mxu0 0.0
        %453 = vmatpush1.xpose.msra.mxu0 %v385
        %454 = vmatprep.subr.mxu0 0.0
        %455 = vmatpush1.xpose.msra.mxu0 %v388
        %456 = vmatprep.subr.mxu0 0.0
        %457 = vmatpush1.xpose.msra.mxu0 %v391
        %458 = vmatprep.subr.mxu0 0.0
        %459 = vmatpush1.xpose.msra.mxu0 %v394
        %460 = vmatprep.mubr.f32.mxu0 0.0
        %461 = vmatmul.mubr.f32.gmra.mrb[0].mxu0 %v289
        %v462 = vpop.f32.mrb[0].mxu0
        %v463 = vadd.f32 %v270, %v462
        %v464 = vpop.f32.mrb[0].mxu0
        %v465 = vadd.f32 %v270, %v464
        %466 = vmatprep.mubr.f32.mxu0 0.0
        %467 = vmatmul.mubr.f32.gmra.mrb[0].mxu0 %v292
        %v468 = vpop.f32.mrb[0].mxu0
        %v469 = vadd.f32 %v275, %v468
        %v470 = vpop.f32.mrb[0].mxu0
        %v471 = vadd.f32 %v275, %v470
        %472 = vmatprep.mubr.f32.mxu0 0.0
        %473 = vmatmul.mubr.f32.gmra.mrb[0].mxu0 %v295
        %v474 = vpop.f32.mrb[0].mxu0
        %v475 = vadd.f32 %v280, %v474
        %v476 = vpop.f32.mrb[0].mxu0
        %v477 = vadd.f32 %v280, %v476
        %478 = vmatprep.mubr.f32.mxu0 0.0
        %479 = vmatmul.mubr.f32.gmra.mrb[0].mxu0 %v298
        %v480 = vpop.f32.mrb[0].mxu0
        %v481 = vadd.f32 %v285, %v480
        %v482 = vpop.f32.mrb[0].mxu0
        %v483 = vadd.f32 %v285, %v482
        %484 = vdwg.mxu0
        %v485 = vmax.f32 %v463, 0.0
        %v486 = vmax.f32 %v465, 0.0
        %v487 = vmax.f32 %v469, 0.0
        %v488 = vmax.f32 %v471, 0.0
        %v489 = vmax.f32 %v475, 0.0
        %v490 = vmax.f32 %v477, 0.0
        %v491 = vmax.f32 %v481, 0.0
        %v492 = vmax.f32 %v483, 0.0
        %v493 = vld [vmem:[%s3] sm:$0x1]
        %s494 = sld [smem:[#allocation2]]
        %v495 = vstv %s494
        %vm496 = vcmask 261120
        %v498 = vsel %vm496, %v493, 0
        %500 = vmatprep.subr.mxu0 %v486
        %501 = vmatpush1.msra.mxu0 %v485
        %502 = vmatprep.subr.mxu0 %v488
        %503 = vmatpush1.msra.mxu0 %v487
        %504 = vmatprep.subr.mxu0 %v490
        %505 = vmatpush1.msra.mxu0 %v489
        %506 = vmatprep.subr.mxu0 %v492
        %507 = vmatpush1.msra.mxu0 %v491
        %508 = vmatprep.subr.mxu0 0.0
        %509 = vmatpush1.msra.mxu0 0.0
        %510 = vmatprep.subr.mxu0 0.0
        %511 = vmatpush1.msra.mxu0 0.0
        %512 = vmatprep.subr.mxu0 0.0
        %513 = vmatpush1.msra.mxu0 0.0
        %514 = vmatprep.subr.mxu0 0.0
        %515 = vmatpush1.msra.mxu0 0.0
        %516 = vmatprep.subr.mxu0 0.0
        %517 = vmatpush1.msra.mxu0 0.0
        %518 = vmatprep.subr.mxu0 0.0
        %519 = vmatpush1.msra.mxu0 0.0
        %520 = vmatprep.subr.mxu0 0.0
        %521 = vmatpush1.msra.mxu0 0.0
        %522 = vmatprep.subr.mxu0 0.0
        %523 = vmatpush1.msra.mxu0 0.0
        %524 = vmatprep.subr.mxu0 0.0
        %525 = vmatpush1.msra.mxu0 0.0
        %526 = vmatprep.subr.mxu0 0.0
        %527 = vmatpush1.msra.mxu0 0.0
        %528 = vmatprep.subr.mxu0 0.0
        %529 = vmatpush1.msra.mxu0 0.0
        %530 = vmatprep.subr.mxu0 0.0
        %531 = vmatpush1.msra.mxu0 0.0
        %532 = vmatprep.subr.mxu0 0.0
        %533 = vmatpush1.msra.mxu0 0.0
        %534 = vmatprep.subr.mxu0 0.0
        %535 = vmatpush1.msra.mxu0 0.0
        %536 = vmatprep.subr.mxu0 0.0
        %537 = vmatpush1.msra.mxu0 0.0
        %538 = vmatprep.subr.mxu0 0.0
        %539 = vmatpush1.msra.mxu0 0.0
        %540 = vmatprep.subr.mxu0 0.0
        %541 = vmatpush1.msra.mxu0 0.0
        %542 = vmatprep.subr.mxu0 0.0
        %543 = vmatpush1.msra.mxu0 0.0
        %544 = vmatprep.subr.mxu0 0.0
        %545 = vmatpush1.msra.mxu0 0.0
        %546 = vmatprep.subr.mxu0 0.0
        %547 = vmatpush1.msra.mxu0 0.0
        %548 = vmatprep.subr.mxu0 0.0
        %549 = vmatpush1.msra.mxu0 0.0
        %550 = vmatprep.subr.mxu0 0.0
        %551 = vmatpush1.msra.mxu0 0.0
        %552 = vmatprep.subr.mxu0 0.0
        %553 = vmatpush1.msra.mxu0 0.0
        %554 = vmatprep.subr.mxu0 0.0
        %555 = vmatpush1.msra.mxu0 0.0
        %556 = vmatprep.subr.mxu0 0.0
        %557 = vmatpush1.msra.mxu0 0.0
        %558 = vmatprep.subr.mxu0 0.0
        %559 = vmatpush1.msra.mxu0 0.0
        %560 = vmatprep.subr.mxu0 0.0
        %561 = vmatpush1.msra.mxu0 0.0
        %562 = vmatprep.subr.mxu0 0.0
        %563 = vmatpush1.msra.mxu0 0.0
        %564 = vmatprep.mubr.f32.mxu0 0.0
        %565 = vmatmul.mubr.f32.gmra.mrb[0].mxu0 %v498
        %v566 = vpop.f32.mrb[0].mxu0
        %v567 = vadd.f32 %v495, %v566
        %v568 = vpop.f32.mrb[0].mxu0
        %v569 = vadd.f32 %v495, %v568
        %570 = vdwg.mxu0
        %v571 = vxor.u32 %v567, 2147483648
        %v572 = vxor.u32 %v569, 2147483648
        %v573 = vmul.f32 %v571, 1.442695
        %v574 = vpow.pop %v573
        %v575 = vmul.f32 %v572, 1.442695
        %v576 = vpow.pop %v575
        %v577 = vadd.f32 %v574, 1.0
        %v578 = vadd.f32 %v576, 1.0
        %v579 = vrcp.pop %v577
        %v580 = vmul.f32 1.0, %v579
        %v581 = vrcp.pop %v578
        %v582 = vmul.f32 1.0, %v581
        %v585 = vcombine.low %v580, %v582
        %v587 = vunpack.c.l.s4 1966171168
        %v588 = vunpack.c.0.s8 %v587
        %v589 = vlaneseq
        %v590 = vshrl.u32 %v589, 7
        %v591 = vsub.s32 %v588, %v590
        %v592 = vrot.slane %v585, %v591
        %v594 = vunpack.c.l.s4 1966171168
        %v595 = vunpack.c.0.s8 %v594
        %v596 = vlaneseq
        %v597 = vshrl.u32 %v596, 7
        %v598 = vsub.s32 %v595, %v597
        %v599 = vrot.slane %v592, %v598
        %v601 = vlaneseq
        %vm602 = vcmp.ge.s32.totalorder %v601, 0
        %vm603 = vcmp.lt.s32.totalorder %v601, 256
        %vm604 = vmand %vm602, %vm603
        %605 = vst.msk [vmem:[%s219] sm:$0x3] %vm604, %v599
        %s606 = sand.u32 %s138, 1
        %s607 = scalar_lea.sflag [#allocation4], %s606
        %s608 = sand.u32 %s138, 1
        %s609 = smul.addr %s608, 2
        %s610 = scalar_lea.vmem [#allocation3], %s609
        // Predicated region
        $region41: #{tpu_custom_call.1} parent=39 // pred_check
          %p611 = pneg %p148
        $region42: #{tpu_custom_call.1} parent=39 // pred_check_branch
          %613 = sbr.rel (%p611) target = $region44
        $region43: #{tpu_custom_call.1} parent=39 // pred_region
          %s614 = smul.u32 2, %s20
          %s616 = ssub.s32 32, 32
          %617 = vsyncadd %s607, %s616
          %s618 = smul.addr %s614, 16
          %s619 = scalar_lea.hbm %s5, %s618
          %s621 = sshll.u32 %s610, 4
          %s622 = int_to_ptr.vmem [resolvable:$true] %s621
          %624 = dma.vmem_to_hbm [thread:$0]  %s622, 32, %s619, %s607
        $region44: #{tpu_custom_call.1} parent=39 // pred_fallthru
          _
      $region40: #{tpu_custom_call.1} parent=5 // pred_fallthru
        _
      %p625 = scmp.le.s32.totalorder 2, %s15
      // Predicated region
      $region45: #{tpu_custom_call.1} parent=5 // pred_check
        %p626 = pneg %p625
      $region46: #{tpu_custom_call.1} parent=5 // pred_check_branch
        %628 = sbr.rel (%p626) target = $region48
      $region47: #{tpu_custom_call.1} parent=5 // pred_region
        %s629 = ssub.s32 %s15, 2
        // Predicated region
        $region49: #{tpu_custom_call.1} parent=47 // pred_check
          %p630 = pneg %p154
        $region50: #{tpu_custom_call.1} parent=47 // pred_check_branch
          %632 = sbr.rel (%p630) target = $region52
        $region51: #{tpu_custom_call.1} parent=47 // pred_region
          %s633 = sand.u32 %s139, 1
          %s634 = scalar_lea.sflag [#allocation4], %s633
          %s635 = sand.u32 %s139, 1
          %s636 = smul.addr %s635, 2
          %s637 = scalar_lea.vmem [#allocation3], %s636
          %638 = dma.done %s634, 32
        $region52: #{tpu_custom_call.1} parent=47 // pred_fallthru
          _
      $region48: #{tpu_custom_call.1} parent=5 // pred_fallthru
        _
    $region6: #{tpu_custom_call.1} parent=1 // loop_footer
      %s19 = sadd.s32 1, %s15
    $region7: #{tpu_custom_call.1} parent=1 // loop_footer_branch
      %14 = sbr.rel target = $region3
    $region8: #{tpu_custom_call.1} parent=1 // loop_exit
      _
    %639 = vsyncpa [#allocation4], 1
    %s640 = scalar_lea.sflag [#allocation4], 1
    %641 = vsyncpa %s640, 1

</llo_original>
